<compile_context>
chip_gen: v6e
topology: v6e:2x2x1
jax: 0.10.0
libtpu: 0.0.40
codegen_flags: <defaults>
</compile_context>

<pallas_src>
import jax
import jax.numpy as jnp
from jax.experimental import pallas as pl
from jax.experimental.pallas import tpu as pltpu


def _make_kernel(H, W, C, Cout, HW, HWp):
    top = W + 1          # interior start inside the halo'd scratch
    tail = top + HW      # interior end

    def kernel(x_ref, wm_ref, dw_ref, pw_ref, o_ref, xp_ref):
        # x_ref : (1, C, HW)    input image, channels on sublanes, H*W on lanes
        # wm_ref: (2, HW)       0/1 row-wrap validity masks (kw=0 row, kw=2 row)
        # dw_ref: (C, 9)        depthwise weights, [c, kh*3+kw]
        # pw_ref: (Cout, C)     pointwise weights
        # o_ref : (1, Cout, HW) lane-dense output
        # xp_ref: (C, HWp) f32  scratch: image with a >= W+1 zero halo on each side

        # Zero ONLY the halo columns (feedback: no full-buffer zero pass).  Done
        # every grid step: scratch persists per-core and with a "parallel" batch
        # axis each core only sees a subset of steps, so gating on step 0 is unsafe.
        xp_ref[:, :top] = jnp.zeros((C, top), jnp.float32)
        if HWp > tail:
            xp_ref[:, tail:HWp] = jnp.zeros((C, HWp - tail), jnp.float32)
        # Single interior copy, casting to f32 once (bf16 inputs stay off the VPU).
        xp_ref[:, top:tail] = x_ref[0].astype(jnp.float32)

        # Hoisted mask broadcasts (each reused by the 3 taps of its column).
        m_l = jnp.broadcast_to(wm_ref[0:1, :], (C, HW))   # valid iff w >= 1
        m_r = jnp.broadcast_to(wm_ref[1:2, :], (C, HW))   # valid iff w <= W-2

        # Depthwise 3x3: 9 statically shifted views MAC'd in f32 (no im2col slab).
        # The zero halo handles vertical out-of-bounds taps; the two masks kill the
        # taps that wrapped across a row boundary (horizontal out-of-bounds).
        acc = None
        for t in range(9):
            kh, kw = divmod(t, 3)
            s = kh * W + kw                                   # static lane offset
            piece = xp_ref[:, s:s + HW]                       # (C, HW)
            if kw == 0:
                piece = piece * m_l
            elif kw == 2:
                piece = piece * m_r
            term = piece * dw_ref[:, t:t + 1]                 # per-channel tap weight
            acc = term if acc is None else acc + term

        # Pointwise 1x1: one MXU contraction (Cout, C) @ (C, HW), f32 accumulation.
        out = jnp.dot(pw_ref[...], acc, preferred_element_type=jnp.float32)
        o_ref[0] = out.astype(o_ref.dtype)

    return kernel


def depthwise_conv_pallas(x_nchw, dw_torch, pw_torch):
    """x_nchw: (N, Cin, H, W); dw_torch: (Cin, 1, 3, 3); pw_torch: (Cout, Cin, 1, 1)."""
    N, C, H, W = x_nchw.shape
    Cout = pw_torch.shape[0]
    HW = H * W
    HWp = ((HW + 2 * W + 2 + 127) // 128) * 128     # halo'd scratch width, lane-padded
    out_dt = x_nchw.dtype

    # Flatten spatial so H*W sits on the 128-wide lane axis (free reshape).
    x_flat = x_nchw.reshape(N, C, HW)

    # Weights in f32 (no dw*pw pre-fusion: depthwise stays separate so the MXU K
    # axis is just C and there is no extra rounding of the fused product).
    dw = dw_torch[:, 0, :, :].reshape(C, 9).astype(jnp.float32)      # [c, kh*3+kw]
    pw = pw_torch[:, :, 0, 0].astype(jnp.float32)                    # (Cout, C)

    # 0/1 masks killing taps that wrapped across a row boundary (left/right halo).
    w_idx = jnp.arange(HW, dtype=jnp.int32) % W
    wmask = jnp.stack([(w_idx >= 1), (w_idx <= W - 2)]).astype(jnp.float32)  # (2, HW)

    kernel = _make_kernel(H, W, C, Cout, HW, HWp)

    out_flat = pl.pallas_call(
        kernel,
        out_shape=jax.ShapeDtypeStruct((N, Cout, HW), out_dt),
        grid_spec=pltpu.PrefetchScalarGridSpec(
            num_scalar_prefetch=0,
            grid=(N,),
            in_specs=[
                pl.BlockSpec((1, C, HW), lambda n: (n, 0, 0)),
                pl.BlockSpec((2, HW), lambda n: (0, 0)),
                pl.BlockSpec((C, 9), lambda n: (0, 0)),
                pl.BlockSpec((Cout, C), lambda n: (0, 0)),
            ],
            out_specs=pl.BlockSpec((1, Cout, HW), lambda n: (n, 0, 0)),
            scratch_shapes=[
                pltpu.VMEM((C, HWp), jnp.float32),   # zero-halo'd image (f32)
            ],
        ),
        compiler_params=pltpu.CompilerParams(
            dimension_semantics=("parallel",),        # N=2 -> both v7x TensorCores
            vmem_limit_bytes=48 * 1024 * 1024,        # explicit v7x-safe budget
        ),
    )(x_flat, wmask, dw, pw)

    # (N, Cout, H*W) -> NCHW, a free reshape.
    return out_flat.reshape(N, Cout, H, W)


def _reference(x_nchw, dw_torch, pw_torch):
    """Pure-JAX reference via lax.conv_general_dilated (matches PyTorch semantics)."""
    N, C, H, W = x_nchw.shape
    x_nhwc = jnp.transpose(x_nchw, (0, 2, 3, 1))
    # depthwise: HWIO weight with I=1, feature_group_count=C
    dw_hwio = jnp.transpose(dw_torch, (2, 3, 1, 0))          # (3,3,1,C)
    y = jax.lax.conv_general_dilated(
        x_nhwc, dw_hwio, window_strides=(1, 1), padding=((1, 1), (1, 1)),
        dimension_numbers=("NHWC", "HWIO", "NHWC"), feature_group_count=C)
    # pointwise: (1,1,C,Cout)
    pw_hwio = jnp.transpose(pw_torch, (2, 3, 1, 0))
    z = jax.lax.conv_general_dilated(
        y, pw_hwio, window_strides=(1, 1), padding="VALID",
        dimension_numbers=("NHWC", "HWIO", "NHWC"))
    return jnp.transpose(z, (0, 3, 1, 2))


if __name__ == "__main__":
    # small shapes consistent with the module: batch=2, cin=4, cout=8, spatial=16
    N, Cin, Cout, H, W = 2, 4, 8, 16, 16

    key = jax.random.PRNGKey(0)
    kx, kd, kp = jax.random.split(key, 3)
    x = jax.random.normal(kx, (N, Cin, H, W), dtype=jnp.float32)
    dw_w = jax.random.normal(kd, (Cin, 1, 3, 3), dtype=jnp.float32) * 0.1
    pw_w = jax.random.normal(kp, (Cout, Cin, 1, 1), dtype=jnp.float32) * 0.1

    out = depthwise_conv_pallas(x, dw_w, pw_w)
    out = jax.block_until_ready(out)

    ref = _reference(x, dw_w, pw_w)
    assert out.shape == (N, Cout, H, W)
    assert jnp.allclose(out, ref, atol=1e-3, rtol=1e-3), "mismatch vs reference"

    print("KERNEL_OK")
</pallas_src>

<mosaic_0001>
module attributes {stable_mosaic.version = 11 : i64} {
  func.func @kernel(%arg0: i32, %arg1: memref<1x4x256xf32, #tpu.memory_space<vmem>>, %arg2: memref<2x256xf32, #tpu.memory_space<vmem>>, %arg3: memref<4x9xf32, #tpu.memory_space<vmem>>, %arg4: memref<8x4xf32, #tpu.memory_space<vmem>>, %arg5: memref<1x8x256xf32, #tpu.memory_space<vmem>>, %arg6: memref<4x384xf32, #tpu.memory_space<vmem>>) attributes {dimension_semantics = [#tpu.dimension_semantics<parallel>], iteration_bounds = array<i64: 2>, scalar_prefetch = 0 : i64, scratch_operands = 1 : i64, tpu.core_type = #tpu.core_type<tc>, window_params = [{transform_indices = @transform_0, window_bounds = array<i64: 1, 4, 256>}, {pipeline_mode = #tpu.pipeline_mode<synchronous>, transform_indices = @transform_1, window_bounds = array<i64: 2, 256>}, {pipeline_mode = #tpu.pipeline_mode<synchronous>, transform_indices = @transform_2, window_bounds = array<i64: 4, 9>}, {pipeline_mode = #tpu.pipeline_mode<synchronous>, transform_indices = @transform_3, window_bounds = array<i64: 8, 4>}, {transform_indices = @transform_4, window_bounds = array<i64: 1, 8, 256>}]} {
    %cst = arith.constant 0.000000e+00 : f32
    %0 = vector.broadcast %cst : f32 to vector<4x17xf32>
    %c0 = arith.constant 0 : index
    %c0_0 = arith.constant 0 : index
    %1 = vector.load %arg6[%c0, %c0_0] : memref<4x384xf32, #tpu.memory_space<vmem>>, vector<4x17xf32>
    tpu.vector_store %arg6[%c0, %c0_0], %0 {strides = array<i32>} : memref<4x384xf32, #tpu.memory_space<vmem>>, vector<4x17xf32>,
    %cst_1 = arith.constant 0.000000e+00 : f32
    %2 = vector.broadcast %cst_1 : f32 to vector<4x111xf32>
    %c0_2 = arith.constant 0 : index
    %c273 = arith.constant 273 : index
    %3 = vector.load %arg6[%c0_2, %c273] : memref<4x384xf32, #tpu.memory_space<vmem>>, vector<4x111xf32>
    tpu.vector_store %arg6[%c0_2, %c273], %2 {strides = array<i32>} : memref<4x384xf32, #tpu.memory_space<vmem>>, vector<4x111xf32>,
    %c0_3 = arith.constant 0 : index
    %c0_4 = arith.constant 0 : index
    %c0_5 = arith.constant 0 : index
    %4 = vector.load %arg1[%c0_3, %c0_4, %c0_5] : memref<1x4x256xf32, #tpu.memory_space<vmem>>, vector<1x4x256xf32>
    %5 = vector.shape_cast %4 : vector<1x4x256xf32> to vector<4x256xf32>
    %c0_6 = arith.constant 0 : index
    %c17 = arith.constant 17 : index
    %6 = vector.load %arg6[%c0_6, %c17] : memref<4x384xf32, #tpu.memory_space<vmem>>, vector<4x256xf32>
    tpu.vector_store %arg6[%c0_6, %c17], %5 {strides = array<i32>} : memref<4x384xf32, #tpu.memory_space<vmem>>, vector<4x256xf32>,
    %c0_7 = arith.constant 0 : index
    %c0_8 = arith.constant 0 : index
    %7 = vector.load %arg2[%c0_7, %c0_8] : memref<2x256xf32, #tpu.memory_space<vmem>>, vector<1x256xf32>
    %8 = vector.shape_cast %7 : vector<1x256xf32> to vector<1x256xf32>
    %9 = vector.broadcast %8 : vector<1x256xf32> to vector<4x256xf32>
    %c1 = arith.constant 1 : index
    %c0_9 = arith.constant 0 : index
    %10 = vector.load %arg2[%c1, %c0_9] : memref<2x256xf32, #tpu.memory_space<vmem>>, vector<1x256xf32>
    %11 = vector.shape_cast %10 : vector<1x256xf32> to vector<1x256xf32>
    %12 = vector.broadcast %11 : vector<1x256xf32> to vector<4x256xf32>
    %c0_10 = arith.constant 0 : index
    %c0_11 = arith.constant 0 : index
    %13 = vector.load %arg6[%c0_10, %c0_11] : memref<4x384xf32, #tpu.memory_space<vmem>>, vector<4x256xf32>
    %14 = arith.mulf %13, %9 : vector<4x256xf32>
    %c0_12 = arith.constant 0 : index
    %c0_13 = arith.constant 0 : index
    %15 = vector.load %arg3[%c0_12, %c0_13] : memref<4x9xf32, #tpu.memory_space<vmem>>, vector<4x1xf32>
    %16 = vector.broadcast %15 : vector<4x1xf32> to vector<4x256xf32>
    %17 = arith.mulf %14, %16 : vector<4x256xf32>
    %c0_14 = arith.constant 0 : index
    %c1_15 = arith.constant 1 : index
    %18 = vector.load %arg6[%c0_14, %c1_15] : memref<4x384xf32, #tpu.memory_space<vmem>>, vector<4x256xf32>
    %c0_16 = arith.constant 0 : index
    %c1_17 = arith.constant 1 : index
    %19 = vector.load %arg3[%c0_16, %c1_17] : memref<4x9xf32, #tpu.memory_space<vmem>>, vector<4x1xf32>
    %20 = vector.broadcast %19 : vector<4x1xf32> to vector<4x256xf32>
    %21 = arith.mulf %18, %20 : vector<4x256xf32>
    %22 = arith.addf %17, %21 : vector<4x256xf32>
    %c0_18 = arith.constant 0 : index
    %c2 = arith.constant 2 : index
    %23 = vector.load %arg6[%c0_18, %c2] : memref<4x384xf32, #tpu.memory_space<vmem>>, vector<4x256xf32>
    %24 = arith.mulf %23, %12 : vector<4x256xf32>
    %c0_19 = arith.constant 0 : index
    %c2_20 = arith.constant 2 : index
    %25 = vector.load %arg3[%c0_19, %c2_20] : memref<4x9xf32, #tpu.memory_space<vmem>>, vector<4x1xf32>
    %26 = vector.broadcast %25 : vector<4x1xf32> to vector<4x256xf32>
    %27 = arith.mulf %24, %26 : vector<4x256xf32>
    %28 = arith.addf %22, %27 : vector<4x256xf32>
    %c0_21 = arith.constant 0 : index
    %c16 = arith.constant 16 : index
    %29 = vector.load %arg6[%c0_21, %c16] : memref<4x384xf32, #tpu.memory_space<vmem>>, vector<4x256xf32>
    %30 = arith.mulf %29, %9 : vector<4x256xf32>
    %c0_22 = arith.constant 0 : index
    %c3 = arith.constant 3 : index
    %31 = vector.load %arg3[%c0_22, %c3] : memref<4x9xf32, #tpu.memory_space<vmem>>, vector<4x1xf32>
    %32 = vector.broadcast %31 : vector<4x1xf32> to vector<4x256xf32>
    %33 = arith.mulf %30, %32 : vector<4x256xf32>
    %34 = arith.addf %28, %33 : vector<4x256xf32>
    %c0_23 = arith.constant 0 : index
    %c17_24 = arith.constant 17 : index
    %35 = vector.load %arg6[%c0_23, %c17_24] : memref<4x384xf32, #tpu.memory_space<vmem>>, vector<4x256xf32>
    %c0_25 = arith.constant 0 : index
    %c4 = arith.constant 4 : index
    %36 = vector.load %arg3[%c0_25, %c4] : memref<4x9xf32, #tpu.memory_space<vmem>>, vector<4x1xf32>
    %37 = vector.broadcast %36 : vector<4x1xf32> to vector<4x256xf32>
    %38 = arith.mulf %35, %37 : vector<4x256xf32>
    %39 = arith.addf %34, %38 : vector<4x256xf32>
    %c0_26 = arith.constant 0 : index
    %c18 = arith.constant 18 : index
    %40 = vector.load %arg6[%c0_26, %c18] : memref<4x384xf32, #tpu.memory_space<vmem>>, vector<4x256xf32>
    %41 = arith.mulf %40, %12 : vector<4x256xf32>
    %c0_27 = arith.constant 0 : index
    %c5 = arith.constant 5 : index
    %42 = vector.load %arg3[%c0_27, %c5] : memref<4x9xf32, #tpu.memory_space<vmem>>, vector<4x1xf32>
    %43 = vector.broadcast %42 : vector<4x1xf32> to vector<4x256xf32>
    %44 = arith.mulf %41, %43 : vector<4x256xf32>
    %45 = arith.addf %39, %44 : vector<4x256xf32>
    %c0_28 = arith.constant 0 : index
    %c32 = arith.constant 32 : index
    %46 = vector.load %arg6[%c0_28, %c32] : memref<4x384xf32, #tpu.memory_space<vmem>>, vector<4x256xf32>
    %47 = arith.mulf %46, %9 : vector<4x256xf32>
    %c0_29 = arith.constant 0 : index
    %c6 = arith.constant 6 : index
    %48 = vector.load %arg3[%c0_29, %c6] : memref<4x9xf32, #tpu.memory_space<vmem>>, vector<4x1xf32>
    %49 = vector.broadcast %48 : vector<4x1xf32> to vector<4x256xf32>
    %50 = arith.mulf %47, %49 : vector<4x256xf32>
    %51 = arith.addf %45, %50 : vector<4x256xf32>
    %c0_30 = arith.constant 0 : index
    %c33 = arith.constant 33 : index
    %52 = vector.load %arg6[%c0_30, %c33] : memref<4x384xf32, #tpu.memory_space<vmem>>, vector<4x256xf32>
    %c0_31 = arith.constant 0 : index
    %c7 = arith.constant 7 : index
    %53 = vector.load %arg3[%c0_31, %c7] : memref<4x9xf32, #tpu.memory_space<vmem>>, vector<4x1xf32>
    %54 = vector.broadcast %53 : vector<4x1xf32> to vector<4x256xf32>
    %55 = arith.mulf %52, %54 : vector<4x256xf32>
    %56 = arith.addf %51, %55 : vector<4x256xf32>
    %c0_32 = arith.constant 0 : index
    %c34 = arith.constant 34 : index
    %57 = vector.load %arg6[%c0_32, %c34] : memref<4x384xf32, #tpu.memory_space<vmem>>, vector<4x256xf32>
    %58 = arith.mulf %57, %12 : vector<4x256xf32>
    %c0_33 = arith.constant 0 : index
    %c8 = arith.constant 8 : index
    %59 = vector.load %arg3[%c0_33, %c8] : memref<4x9xf32, #tpu.memory_space<vmem>>, vector<4x1xf32>
    %60 = vector.broadcast %59 : vector<4x1xf32> to vector<4x256xf32>
    %61 = arith.mulf %58, %60 : vector<4x256xf32>
    %62 = arith.addf %56, %61 : vector<4x256xf32>
    %c0_34 = arith.constant 0 : index
    %c0_35 = arith.constant 0 : index
    %63 = vector.load %arg4[%c0_34, %c0_35] : memref<8x4xf32, #tpu.memory_space<vmem>>, vector<8x4xf32>
    %cst_36 = arith.constant dense<0.000000e+00> : vector<8x256xf32>
    %64 = tpu.matmul %63, %62, %cst_36 {dimension_numbers = #tpu.dot_dimension_numbers<[1], [0], [0], [1], [0, 0, 1, 1], [], []>} : vector<8x4xf32>, vector<4x256xf32>, vector<8x256xf32> -> vector<8x256xf32>
    %c0_37 = arith.constant 0 : index
    %c0_38 = arith.constant 0 : index
    %c0_39 = arith.constant 0 : index
    %65 = vector.load %arg5[%c0_37, %c0_38, %c0_39] : memref<1x8x256xf32, #tpu.memory_space<vmem>>, vector<1x8x256xf32>
    %66 = vector.shape_cast %65 : vector<1x8x256xf32> to vector<8x256xf32>
    %67 = vector.shape_cast %64 : vector<8x256xf32> to vector<1x8x256xf32>
    tpu.vector_store %arg5[%c0_37, %c0_38, %c0_39], %67 {strides = array<i32>} : memref<1x8x256xf32, #tpu.memory_space<vmem>>, vector<1x8x256xf32>,
    return
  }
  func.func @transform_0(%arg0: i32) -> (i32, i32, i32) {
    %c0_i32 = arith.constant 0 : i32
    %c0_i32_0 = arith.constant 0 : i32
    %c0_i32_1 = arith.constant 0 : i32
    return %arg0, %c0_i32, %c0_i32_0 : i32, i32, i32
  }
  func.func @transform_1(%arg0: i32) -> (i32, i32) {
    %c0_i32 = arith.constant 0 : i32
    %c0_i32_0 = arith.constant 0 : i32
    %c0_i32_1 = arith.constant 0 : i32
    return %c0_i32, %c0_i32_0 : i32, i32
  }
  func.func @transform_2(%arg0: i32) -> (i32, i32) {
    %c0_i32 = arith.constant 0 : i32
    %c0_i32_0 = arith.constant 0 : i32
    %c0_i32_1 = arith.constant 0 : i32
    return %c0_i32, %c0_i32_0 : i32, i32
  }
  func.func @transform_3(%arg0: i32) -> (i32, i32) {
    %c0_i32 = arith.constant 0 : i32
    %c0_i32_0 = arith.constant 0 : i32
    %c0_i32_1 = arith.constant 0 : i32
    return %c0_i32, %c0_i32_0 : i32, i32
  }
  func.func @transform_4(%arg0: i32) -> (i32, i32, i32) {
    %c0_i32 = arith.constant 0 : i32
    %c0_i32_0 = arith.constant 0 : i32
    %c0_i32_1 = arith.constant 0 : i32
    return %arg0, %c0_i32, %c0_i32_0 : i32, i32, i32
  }
}

</mosaic_0001>

<llo_original>
// kernel: tpu_custom_call.1
$region0: #{tpu_custom_call.1}
  #allocation0 [shape = 'u32[]', space=smem, size = 0x4, offset = 0x4, fixed_abs, tag = 'smem constant byte address 0x4 - core index']
  #allocation1 [shape = 'u32[144,128]{1,0:T(1,128)}', space=vmem, size = 0x12000, scoped, tag = 'internal scratch']
  #allocation2 [shape = 'f32[4,384]{1,0:T(4,128)}', space=vmem, size = 0x1800, scoped, tag = 'scratch operand']
  %s0 = inlined_call_operand.hbm [shape: f32[2,4,256], index: 0, kind: input, shape index: {}]
  %s1 = inlined_call_operand.vmem [shape: f32[2,256], index: 1, kind: input, shape index: {}]
  %s2 = inlined_call_operand.vmem [shape: f32[4,9], index: 2, kind: input, shape index: {}]
  %s3 = inlined_call_operand.vmem [shape: f32[8,4], index: 3, kind: input, shape index: {}]
  %s4 = inlined_call_operand.hbm [shape: f32[2,8,256], index: 4, kind: output, shape index: {}]
  %s5 = sld [smem:[#allocation0]]
  $region53: #{tpu_custom_call.1} parent=0
    _
  %s7 = ssub.s32 1, %s5
  %s8 = scalar_select 0, %s7, %s5
  $region1: #{tpu_custom_call.1} parent=0
    #allocation3 [shape = 'u8[8192]{0}', space=vmem, size = 0x2000, scoped, tag = 'input window, operand 0']
    #allocation4 [shape = 's32[2]{0}', space=sflag, size = 0x8, scoped, tag = 'scoped memory for tpu_custom_call.1']
    #allocation5 [shape = 's32[2]{0}', space=sflag, size = 0x8, scoped, tag = 'scoped memory for tpu_custom_call.1']
    #allocation6 [shape = 'u8[16384]{0}', space=vmem, size = 0x4000, scoped, tag = 'output window, operand 0']
    %9 = vsyncpa [#allocation4], 0
    %s10 = scalar_lea.sflag [#allocation4], 1
    %11 = vsyncpa %s10, 0
    %12 = vsyncpa [#allocation5], 0
    %s13 = scalar_lea.sflag [#allocation5], 1
    %14 = vsyncpa %s13, 0
    loop: start=0, step=1, limit=4
    $region2: #{tpu_custom_call.1} parent=1 // loop_pre_header
      _
    $region3: #{tpu_custom_call.1} parent=1 // loop_header
      %s16 = sphi 0, %s20
      %p17 = scmp.ge.s32.totalorder %s16, 4
      %s26 = sphi 0, %s28
      %s29 = sphi 0, %s26
      %s30 = sphi 0, %s29
      %s46 = sphi 0, %s30
      %s50 = sphi 0, %s50
      %s52 = sphi 0, %s50
      %s53 = sphi 0, %s52
      %s67 = sphi 0, %s53
      %s71 = sphi 0, %s71
      %s73 = sphi 0, %s71
      %s74 = sphi 0, %s73
      %s88 = sphi 0, %s74
      %s92 = sphi 0, %s92
      %s94 = sphi 0, %s92
      %s95 = sphi 0, %s94
      %s109 = sphi 0, %s95
      %s115 = sphi 0, %s117
      %s118 = sphi 0, %s115
      %s119 = sphi 0, %s118
      %s135 = sphi 0, %s119
    $region4: #{tpu_custom_call.1} parent=1 // loop_header_branch
      %19 = sbr.rel (%p17) target = $region8
    $region5: #{tpu_custom_call.1} parent=1 // loop_body
      %s21 = ssub.s32 %s16, 1
      %s22 = ssub.s32 %s16, 2
      %s23 = sadd.s32 %s16, 1
      %s24 = ssub.s32 %s16, %s23
      %p25 = scmp.eq.s32.totalorder %s24, 0
      %s27 = sadd.s32 %s26, 1
      %s28 = scalar_select %p25, %s26, %s27
      %p31 = pneg %p25
      %p32 = scmp.eq.s32.totalorder %s16, 1
      %p33 = por %p31, %p32
      %p34 = scmp.ne.s32.totalorder %s26, %s29
      %p35 = scmp.eq.s32.totalorder %s16, 0
      %p36 = por %p34, %p35
      %p37 = scmp.ne.s32.totalorder %s26, %s29
      %p38 = scmp.eq.s32.totalorder %s21, 1
      %p39 = por %p37, %p38
      %p40 = scmp.ne.s32.totalorder %s29, %s30
      %p41 = scmp.eq.s32.totalorder %s21, 0
      %p42 = por %p40, %p41
      %p43 = scmp.ne.s32.totalorder %s29, %s30
      %p44 = scmp.eq.s32.totalorder %s22, 1
      %p45 = por %p43, %p44
      %p47 = scmp.ne.s32.totalorder %s30, %s46
      %p48 = scmp.eq.s32.totalorder %s22, 0
      %p49 = por %p47, %p48
      %s51 = sadd.s32 %s50, 1
      %p54 = scmp.eq.s32.totalorder %s16, 1
      %p55 = scmp.ne.s32.totalorder %s50, %s52
      %p56 = scmp.eq.s32.totalorder %s16, 0
      %p57 = por %p55, %p56
      %p58 = scmp.ne.s32.totalorder %s50, %s52
      %p59 = scmp.eq.s32.totalorder %s21, 1
      %p60 = por %p58, %p59
      %p61 = scmp.ne.s32.totalorder %s52, %s53
      %p62 = scmp.eq.s32.totalorder %s21, 0
      %p63 = por %p61, %p62
      %p64 = scmp.ne.s32.totalorder %s52, %s53
      %p65 = scmp.eq.s32.totalorder %s22, 1
      %p66 = por %p64, %p65
      %p68 = scmp.ne.s32.totalorder %s53, %s67
      %p69 = scmp.eq.s32.totalorder %s22, 0
      %p70 = por %p68, %p69
      %s72 = sadd.s32 %s71, 1
      %p75 = scmp.eq.s32.totalorder %s16, 1
      %p76 = scmp.ne.s32.totalorder %s71, %s73
      %p77 = scmp.eq.s32.totalorder %s16, 0
      %p78 = por %p76, %p77
      %p79 = scmp.ne.s32.totalorder %s71, %s73
      %p80 = scmp.eq.s32.totalorder %s21, 1
      %p81 = por %p79, %p80
      %p82 = scmp.ne.s32.totalorder %s73, %s74
      %p83 = scmp.eq.s32.totalorder %s21, 0
      %p84 = por %p82, %p83
      %p85 = scmp.ne.s32.totalorder %s73, %s74
      %p86 = scmp.eq.s32.totalorder %s22, 1
      %p87 = por %p85, %p86
      %p89 = scmp.ne.s32.totalorder %s74, %s88
      %p90 = scmp.eq.s32.totalorder %s22, 0
      %p91 = por %p89, %p90
      %s93 = sadd.s32 %s92, 1
      %p96 = scmp.eq.s32.totalorder %s16, 1
      %p97 = scmp.ne.s32.totalorder %s92, %s94
      %p98 = scmp.eq.s32.totalorder %s16, 0
      %p99 = por %p97, %p98
      %p100 = scmp.ne.s32.totalorder %s92, %s94
      %p101 = scmp.eq.s32.totalorder %s21, 1
      %p102 = por %p100, %p101
      %p103 = scmp.ne.s32.totalorder %s94, %s95
      %p104 = scmp.eq.s32.totalorder %s21, 0
      %p105 = por %p103, %p104
      %p106 = scmp.ne.s32.totalorder %s94, %s95
      %p107 = scmp.eq.s32.totalorder %s22, 1
      %p108 = por %p106, %p107
      %p110 = scmp.ne.s32.totalorder %s95, %s109
      %p111 = scmp.eq.s32.totalorder %s22, 0
      %p112 = por %p110, %p111
      %s113 = ssub.s32 %s16, %s23
      %p114 = scmp.eq.s32.totalorder %s113, 0
      %s116 = sadd.s32 %s115, 1
      %s117 = scalar_select %p114, %s115, %s116
      %p120 = pneg %p114
      %p121 = scmp.eq.s32.totalorder %s16, 1
      %p122 = por %p120, %p121
      %p123 = scmp.ne.s32.totalorder %s115, %s118
      %p124 = scmp.eq.s32.totalorder %s16, 0
      %p125 = por %p123, %p124
      %p126 = scmp.ne.s32.totalorder %s115, %s118
      %p127 = scmp.eq.s32.totalorder %s21, 1
      %p128 = por %p126, %p127
      %p129 = scmp.ne.s32.totalorder %s118, %s119
      %p130 = scmp.eq.s32.totalorder %s21, 0
      %p131 = por %p129, %p130
      %p132 = scmp.ne.s32.totalorder %s118, %s119
      %p133 = scmp.eq.s32.totalorder %s22, 1
      %p134 = por %p132, %p133
      %p136 = scmp.ne.s32.totalorder %s119, %s135
      %p137 = scmp.eq.s32.totalorder %s22, 0
      %p138 = por %p136, %p137
      %p139 = scmp.le.s32.totalorder 1, %s16
      %p140 = scmp.lt.s32.totalorder %s16, 3
      %p141 = pnand %p139, %p140
      %p142 = pneg %p141
      // Predicated region
      $region9: #{tpu_custom_call.1} parent=5 // pred_check
        _
      $region10: #{tpu_custom_call.1} parent=5 // pred_check_branch
        %144 = sbr.rel (%p141) target = $region12
      $region11: #{tpu_custom_call.1} parent=5 // pred_region
        %s145 = ssub.s32 %s16, 1
        // Predicated region
        $region13: #{tpu_custom_call.1} parent=11 // pred_check
          %p146 = pneg %p63
        $region14: #{tpu_custom_call.1} parent=11 // pred_check_branch
          %148 = sbr.rel (%p146) target = $region16
        $region15: #{tpu_custom_call.1} parent=11 // pred_region
          _
        $region16: #{tpu_custom_call.1} parent=11 // pred_fallthru
          _
        // Predicated region
        $region17: #{tpu_custom_call.1} parent=11 // pred_check
          %p149 = pneg %p84
        $region18: #{tpu_custom_call.1} parent=11 // pred_check_branch
          %151 = sbr.rel (%p149) target = $region20
        $region19: #{tpu_custom_call.1} parent=11 // pred_region
          _
        $region20: #{tpu_custom_call.1} parent=11 // pred_fallthru
          _
        // Predicated region
        $region21: #{tpu_custom_call.1} parent=11 // pred_check
          %p152 = pneg %p105
        $region22: #{tpu_custom_call.1} parent=11 // pred_check_branch
          %154 = sbr.rel (%p152) target = $region24
        $region23: #{tpu_custom_call.1} parent=11 // pred_region
          _
        $region24: #{tpu_custom_call.1} parent=11 // pred_fallthru
          _
      $region12: #{tpu_custom_call.1} parent=5 // pred_fallthru
        _
      %p155 = scmp.lt.s32.totalorder %s16, 2
      // Predicated region
      $region25: #{tpu_custom_call.1} parent=5 // pred_check
        %p156 = pneg %p155
      $region26: #{tpu_custom_call.1} parent=5 // pred_check_branch
        %158 = sbr.rel (%p156) target = $region28
      $region27: #{tpu_custom_call.1} parent=5 // pred_region
        // Predicated region
        $region29: #{tpu_custom_call.1} parent=27 // pred_check
          %p159 = pneg %p36
        $region30: #{tpu_custom_call.1} parent=27 // pred_check_branch
          %161 = sbr.rel (%p159) target = $region32
        $region31: #{tpu_custom_call.1} parent=27 // pred_region
          %s162 = sand.u32 %s26, 1
          %s163 = scalar_lea.sflag [#allocation4], %s162
          %s164 = sand.u32 %s26, 1
          %s165 = smul.addr %s164, 8
          %s166 = scalar_lea.vmem [#allocation3], %s165
          %s168 = ssub.s32 128, 128
          %169 = vsyncadd %s163, %s168
          %s170 = smul.addr %s16, 2
          %s171 = smul.addr %s170, 64
          %s172 = scalar_lea.hbm %s0, %s171
          %s174 = sshll.u32 %s166, 4
          %s175 = int_to_ptr.vmem [resolvable:$true] %s174
          %177 = dma.hbm_to_vmem [thread:$0]  %s172, 128, %s175, %s163
        $region32: #{tpu_custom_call.1} parent=27 // pred_fallthru
          _
      $region28: #{tpu_custom_call.1} parent=5 // pred_fallthru
        _
      %p178 = scmp.le.s32.totalorder 1, %s16
      %p179 = scmp.lt.s32.totalorder %s16, 3
      %p180 = pnand %p178, %p179
      %p181 = pneg %p180
      // Predicated region
      $region33: #{tpu_custom_call.1} parent=5 // pred_check
        _
      $region34: #{tpu_custom_call.1} parent=5 // pred_check_branch
        %183 = sbr.rel (%p180) target = $region36
      $region35: #{tpu_custom_call.1} parent=5 // pred_region
        %s184 = ssub.s32 %s16, 1
        %s185 = sand.u32 %s29, 1
        %s186 = scalar_lea.sflag [#allocation4], %s185
        %s187 = sand.u32 %s29, 1
        %s188 = smul.addr %s187, 8
        %s189 = scalar_lea.vmem [#allocation3], %s188
        // Predicated region
        $region37: #{tpu_custom_call.1} parent=35 // pred_check
          %p190 = pneg %p42
        $region38: #{tpu_custom_call.1} parent=35 // pred_check_branch
          %192 = sbr.rel (%p190) target = $region40
        $region39: #{tpu_custom_call.1} parent=35 // pred_region
          %193 = dma.done %s186, 128
        $region40: #{tpu_custom_call.1} parent=35 // pred_fallthru
          _
        %s194 = sand.u32 %s29, 1
        %s195 = scalar_lea.sflag [#allocation4], %s194
        %s196 = sand.u32 %s29, 1
        %s197 = smul.addr %s196, 8
        %s198 = scalar_lea.vmem [#allocation3], %s197
        %p199 = pneg %p42
        %p200 = pneg %p39
        %p201 = pneg %p63
        %p202 = pneg %p60
        %p203 = pneg %p84
        %p204 = pneg %p81
        %p205 = pneg %p105
        %p206 = pneg %p102
        %p207 = pneg %p131
        %p208 = pneg %p128
        %s209 = sand.u32 %s118, 1
        %s210 = scalar_lea.sflag [#allocation5], %s209
        %s211 = sand.u32 %s118, 1
        %s212 = smul.addr %s211, 16
        %s213 = scalar_lea.vmem [#allocation6], %s212
        %vm214 = vcmask 134144
        %215 = vst.msk [vmem:[#allocation2] sm:$0xf] %vm214, 0.0
        %vm216 = vcmask 1043592
        %217 = vst.msk [vmem:[#allocation2 + $0x8] sm:$0xf] %vm216, 0.0
        %v218 = vld [vmem:[%s189] sm:$0xff]
        %220 = vrot.lane.b32.xlu0 %v218, 17
        %v221 = vpop.permute.xlu0 %220
        %v222 = vrot.slane %v221, 4
        %vm223 = vcmask 138240
        %v224 = vsel %vm223, %v222, %v221
        %vm227 = vcmask 1047556
        %vm228 = vmor %vm227, %vm216
        %229 = vst.msk [vmem:[#allocation2] sm:$0xff] %vm228, %v224
        %230 = vst.msk [vmem:[#allocation2 + $0x8] sm:$0xf] %vm214, %v222
        %v231 = vld [vmem:[%s1] ss:$2 sm:$0x3]
        %v233 = vlaneseq
        %v234 = vshrl.u32 %v233, 7
        %v235 = vsub.s32 0, %v234
        %v236 = vrot.slane %v231, %v235
        %v237 = vlaneseq
        %v238 = vshrl.u32 %v237, 7
        %v239 = vsub.s32 1, %v238
        %v240 = vrot.slane %v231, %v239
        %s241 = scalar_lea.vmem %s1, 1
        %v242 = vld [vmem:[%s241] ss:$2 sm:$0x3]
        %v244 = vlaneseq
        %v245 = vshrl.u32 %v244, 7
        %v246 = vsub.s32 0, %v245
        %v247 = vrot.slane %v242, %v246
        %v248 = vlaneseq
        %v249 = vshrl.u32 %v248, 7
        %v250 = vsub.s32 1, %v249
        %v251 = vrot.slane %v242, %v250
        %v252 = vld [vmem:[#allocation2] sm:$0xff]
        %v253 = vcombine.low %v236, %v240
        %v255 = vmul.f32 %v252, %v253
        %v256 = vld [vmem:[%s2] sm:$0xf]
        %258 = vset.pattern.permute.xlu0 0
        %259 = vperm.xlu0 %258, %v256
        %v260 = vpop.permute.xlu0 %259
        %v262 = vunpack.c.l.s4 839922192
        %v263 = vunpack.c.0.s8 %v262
        %v264 = vlaneseq
        %v265 = vshrl.u32 %v264, 7
        %v266 = vsub.s32 %v263, %v265
        %v267 = vrot.slane %v260, %v266
        %v269 = vmul.f32 %v255, %v267
        %v270 = vld [vmem:[#allocation2] sm:$0xff]
        %v271 = vld [vmem:[#allocation2 + $0x8] sm:$0xf]
        %272 = vset.pattern.permute.xlu0 1
        %273 = vperm.xlu0 %272, %v256
        %v274 = vpop.permute.xlu0 %273
        %v276 = vunpack.c.l.s4 839922192
        %v277 = vunpack.c.0.s8 %v276
        %v278 = vlaneseq
        %v279 = vshrl.u32 %v278, 7
        %v280 = vsub.s32 %v277, %v279
        %v281 = vrot.slane %v274, %v280
        %v283 = vmul.f32 %v270, %v281
        %v284 = vmul.f32 %v271, %v281
        %287 = vrot.lane.b32.xlu0 %v283, 127
        %v288 = vpop.permute.xlu0 %287
        %289 = vrot.lane.b32.xlu0 %v284, 127
        %v290 = vpop.permute.xlu0 %289
        %v291 = vrot.slane %v288, 4
        %v292 = vrot.slane %v290, 4
        %vm293 = vcmask 1043456
        %v294 = vsel %vm293, %v291, %v292
        %vm295 = vcmask 1039360
        %v296 = vsel %vm295, %v288, %v294
        %v298 = vadd.f32 %v269, %v296
        %v299 = vcombine.low %v247, %v251
        %300 = vrot.lane.b32.xlu0 %v299, 2
        %v301 = vpop.permute.xlu0 %300
        %v302 = vrot.slane %v301, 4
        %vm303 = vcmask 15360
        %v304 = vsel %vm303, %v302, %v301
        %v307 = vmul.f32 %v270, %v304
        %v308 = vmul.f32 %v271, %v302
        %v309 = vld [vmem:[%s2] sm:$0xf]
        %311 = vset.pattern.permute.xlu0 2
        %312 = vperm.xlu0 %311, %v309
        %v313 = vpop.permute.xlu0 %312
        %v315 = vunpack.c.l.s4 839922192
        %v316 = vunpack.c.0.s8 %v315
        %v317 = vlaneseq
        %v318 = vshrl.u32 %v317, 7
        %v319 = vsub.s32 %v316, %v318
        %v320 = vrot.slane %v313, %v319
        %v322 = vmul.f32 %v307, %v320
        %v323 = vmul.f32 %v308, %v320
        %326 = vrot.lane.b32.xlu0 %v322, 126
        %v327 = vpop.permute.xlu0 %326
        %328 = vrot.lane.b32.xlu0 %v323, 126
        %v329 = vpop.permute.xlu0 %328
        %v330 = vrot.slane %v327, 4
        %v331 = vrot.slane %v329, 4
        %v332 = vsel %vm293, %v330, %v331
        %vm333 = vcmask 1031168
        %v334 = vsel %vm333, %v327, %v332
        %v336 = vadd.f32 %v298, %v334
        %v337 = vld [vmem:[#allocation2] sm:$0xff]
        %v338 = vld [vmem:[#allocation2 + $0x8] sm:$0xf]
        %339 = vrot.lane.b32.xlu0 %v253, 16
        %v340 = vpop.permute.xlu0 %339
        %v341 = vrot.slane %v340, 4
        %vm342 = vcmask 130048
        %v343 = vsel %vm342, %v341, %v340
        %v346 = vmul.f32 %v337, %v343
        %v347 = vmul.f32 %v338, %v341
        %v348 = vld [vmem:[%s2] sm:$0xf]
        %350 = vset.pattern.permute.xlu0 3
        %351 = vperm.xlu0 %350, %v348
        %v352 = vpop.permute.xlu0 %351
        %v354 = vunpack.c.l.s4 839922192
        %v355 = vunpack.c.0.s8 %v354
        %v356 = vlaneseq
        %v357 = vshrl.u32 %v356, 7
        %v358 = vsub.s32 %v355, %v357
        %v359 = vrot.slane %v352, %v358
        %v361 = vmul.f32 %v346, %v359
        %v362 = vmul.f32 %v347, %v359
        %365 = vrot.lane.b32.xlu0 %v361, 112
        %v366 = vpop.permute.xlu0 %365
        %367 = vrot.lane.b32.xlu0 %v362, 112
        %v368 = vpop.permute.xlu0 %367
        %v369 = vrot.slane %v366, 4
        %v370 = vrot.slane %v368, 4
        %v371 = vsel %vm293, %v369, %v370
        %vm372 = vcmask 916480
        %v373 = vsel %vm372, %v366, %v371
        %v375 = vadd.f32 %v336, %v373
        %v376 = vld [vmem:[#allocation2] sm:$0xff]
        %v377 = vld [vmem:[#allocation2 + $0x8] sm:$0xf]
        %378 = vset.pattern.permute.xlu0 4
        %379 = vperm.xlu0 %378, %v348
        %v380 = vpop.permute.xlu0 %379
        %v382 = vunpack.c.l.s4 839922192
        %v383 = vunpack.c.0.s8 %v382
        %v384 = vlaneseq
        %v385 = vshrl.u32 %v384, 7
        %v386 = vsub.s32 %v383, %v385
        %v387 = vrot.slane %v380, %v386
        %v389 = vmul.f32 %v376, %v387
        %v390 = vmul.f32 %v377, %v387
        %393 = vrot.lane.b32.xlu0 %v389, 111
        %v394 = vpop.permute.xlu0 %393
        %395 = vrot.lane.b32.xlu0 %v390, 111
        %v396 = vpop.permute.xlu0 %395
        %v397 = vrot.slane %v394, 4
        %v398 = vrot.slane %v396, 4
        %v399 = vsel %vm293, %v397, %v398
        %vm400 = vcmask 908288
        %v401 = vsel %vm400, %v394, %v399
        %v403 = vadd.f32 %v375, %v401
        %404 = vrot.lane.b32.xlu0 %v299, 18
        %v405 = vpop.permute.xlu0 %404
        %v406 = vrot.slane %v405, 4
        %vm407 = vcmask 146432
        %v408 = vsel %vm407, %v406, %v405
        %v411 = vmul.f32 %v376, %v408
        %v412 = vmul.f32 %v377, %v406
        %v413 = vld [vmem:[%s2] sm:$0xf]
        %415 = vset.pattern.permute.xlu0 5
        %416 = vperm.xlu0 %415, %v413
        %v417 = vpop.permute.xlu0 %416
        %v419 = vunpack.c.l.s4 839922192
        %v420 = vunpack.c.0.s8 %v419
        %v421 = vlaneseq
        %v422 = vshrl.u32 %v421, 7
        %v423 = vsub.s32 %v420, %v422
        %v424 = vrot.slane %v417, %v423
        %v426 = vmul.f32 %v411, %v424
        %v427 = vmul.f32 %v412, %v424
        %430 = vrot.lane.b32.xlu0 %v426, 110
        %v431 = vpop.permute.xlu0 %430
        %432 = vrot.lane.b32.xlu0 %v427, 110
        %v433 = vpop.permute.xlu0 %432
        %v434 = vrot.slane %v431, 4
        %v435 = vrot.slane %v433, 4
        %v436 = vsel %vm293, %v434, %v435
        %vm437 = vcmask 900096
        %v438 = vsel %vm437, %v431, %v436
        %v440 = vadd.f32 %v403, %v438
        %v441 = vld [vmem:[#allocation2] sm:$0xff]
        %v442 = vld [vmem:[#allocation2 + $0x8] sm:$0xf]
        %443 = vrot.lane.b32.xlu0 %v253, 32
        %v444 = vpop.permute.xlu0 %443
        %v445 = vrot.slane %v444, 4
        %vm446 = vcmask 261120
        %v447 = vsel %vm446, %v445, %v444
        %v450 = vmul.f32 %v441, %v447
        %v451 = vmul.f32 %v442, %v445
        %v452 = vld [vmem:[%s2] sm:$0xf]
        %454 = vset.pattern.permute.xlu0 6
        %455 = vperm.xlu0 %454, %v452
        %v456 = vpop.permute.xlu0 %455
        %v458 = vunpack.c.l.s4 839922192
        %v459 = vunpack.c.0.s8 %v458
        %v460 = vlaneseq
        %v461 = vshrl.u32 %v460, 7
        %v462 = vsub.s32 %v459, %v461
        %v463 = vrot.slane %v456, %v462
        %v465 = vmul.f32 %v450, %v463
        %v466 = vmul.f32 %v451, %v463
        %469 = vrot.lane.b32.xlu0 %v465, 96
        %v470 = vpop.permute.xlu0 %469
        %471 = vrot.lane.b32.xlu0 %v466, 96
        %v472 = vpop.permute.xlu0 %471
        %v473 = vrot.slane %v470, 4
        %v474 = vrot.slane %v472, 4
        %v475 = vsel %vm293, %v473, %v474
        %vm476 = vcmask 785408
        %v477 = vsel %vm476, %v470, %v475
        %v479 = vadd.f32 %v440, %v477
        %v480 = vld [vmem:[#allocation2] sm:$0xff]
        %v481 = vld [vmem:[#allocation2 + $0x8] sm:$0xf]
        %482 = vset.pattern.permute.xlu0 7
        %483 = vperm.xlu0 %482, %v452
        %v484 = vpop.permute.xlu0 %483
        %v486 = vunpack.c.l.s4 839922192
        %v487 = vunpack.c.0.s8 %v486
        %v488 = vlaneseq
        %v489 = vshrl.u32 %v488, 7
        %v490 = vsub.s32 %v487, %v489
        %v491 = vrot.slane %v484, %v490
        %v493 = vmul.f32 %v480, %v491
        %v494 = vmul.f32 %v481, %v491
        %497 = vrot.lane.b32.xlu0 %v493, 95
        %v498 = vpop.permute.xlu0 %497
        %499 = vrot.lane.b32.xlu0 %v494, 95
        %v500 = vpop.permute.xlu0 %499
        %v501 = vrot.slane %v498, 4
        %v502 = vrot.slane %v500, 4
        %v503 = vsel %vm293, %v501, %v502
        %vm504 = vcmask 777216
        %v505 = vsel %vm504, %v498, %v503
        %v507 = vadd.f32 %v479, %v505
        %508 = vrot.lane.b32.xlu0 %v299, 34
        %v509 = vpop.permute.xlu0 %508
        %v510 = vrot.slane %v509, 4
        %vm511 = vcmask 277504
        %v512 = vsel %vm511, %v510, %v509
        %v515 = vmul.f32 %v480, %v512
        %v516 = vmul.f32 %v481, %v510
        %v517 = vld [vmem:[%s2] sm:$0xf]
        %519 = vset.pattern.permute.xlu0 8
        %520 = vperm.xlu0 %519, %v517
        %v521 = vpop.permute.xlu0 %520
        %v523 = vunpack.c.l.s4 839922192
        %v524 = vunpack.c.0.s8 %v523
        %v525 = vlaneseq
        %v526 = vshrl.u32 %v525, 7
        %v527 = vsub.s32 %v524, %v526
        %v528 = vrot.slane %v521, %v527
        %v530 = vmul.f32 %v515, %v528
        %v531 = vmul.f32 %v516, %v528
        %534 = vrot.lane.b32.xlu0 %v530, 94
        %v535 = vpop.permute.xlu0 %534
        %536 = vrot.lane.b32.xlu0 %v531, 94
        %v537 = vpop.permute.xlu0 %536
        %v538 = vrot.slane %v535, 4
        %v539 = vrot.slane %v537, 4
        %v540 = vsel %vm293, %v538, %v539
        %vm541 = vcmask 769024
        %v542 = vsel %vm541, %v535, %v540
        %v544 = vadd.f32 %v507, %v542
        %v545 = vld [vmem:[%s3] sm:$0xff]
        %v547 = vcombine.high %v544, %v544
        %vm548 = vcmask 31744
        %v550 = vsel %vm548, %v545, 0
        %v552 = vsel %vm293, %v544, 0
        %v554 = vsel %vm293, %v547, 0
        %556 = vmatprep.subr.mxu0 0.0
        %557 = vmatpush1.msra.mxu0 0.0
        %558 = vmatprep.subr.mxu0 0.0
        %559 = vmatpush1.msra.mxu0 0.0
        %560 = vmatprep.subr.mxu0 0.0
        %561 = vmatpush1.msra.mxu0 0.0
        %562 = vmatprep.subr.mxu0 0.0
        %563 = vmatpush1.msra.mxu0 0.0
        %564 = vmatprep.subr.mxu0 0.0
        %565 = vmatpush1.msra.mxu0 0.0
        %566 = vmatprep.subr.mxu0 0.0
        %567 = vmatpush1.msra.mxu0 0.0
        %568 = vmatprep.subr.mxu0 0.0
        %569 = vmatpush1.msra.mxu0 0.0
        %570 = vmatprep.subr.mxu0 0.0
        %571 = vmatpush1.msra.mxu0 0.0
        %572 = vmatprep.subr.mxu0 0.0
        %573 = vmatpush1.msra.mxu0 0.0
        %574 = vmatprep.subr.mxu0 0.0
        %575 = vmatpush1.msra.mxu0 0.0
        %576 = vmatprep.subr.mxu0 0.0
        %577 = vmatpush1.msra.mxu0 0.0
        %578 = vmatprep.subr.mxu0 0.0
        %579 = vmatpush1.msra.mxu0 0.0
        %580 = vmatprep.subr.mxu0 0.0
        %581 = vmatpush1.msra.mxu0 0.0
        %582 = vmatprep.subr.mxu0 0.0
        %583 = vmatpush1.msra.mxu0 0.0
        %584 = vmatprep.subr.mxu0 0.0
        %585 = vmatpush1.msra.mxu0 0.0
        %586 = vmatprep.subr.mxu0 %v554
        %587 = vmatpush1.msra.mxu0 %v552
        %588 = vmatprep.subr.mxu0 0.0
        %589 = vmatpush2.msra.mxu0 0.0
        %590 = vmatprep.subr.mxu0 0.0
        %591 = vmatpush2.msra.mxu0 0.0
        %592 = vmatprep.subr.mxu0 0.0
        %593 = vmatpush2.msra.mxu0 0.0
        %594 = vmatprep.subr.mxu0 0.0
        %595 = vmatpush2.msra.mxu0 0.0
        %596 = vmatprep.subr.mxu0 0.0
        %597 = vmatpush2.msra.mxu0 0.0
        %598 = vmatprep.subr.mxu0 0.0
        %599 = vmatpush2.msra.mxu0 0.0
        %600 = vmatprep.subr.mxu0 0.0
        %601 = vmatpush2.msra.mxu0 0.0
        %602 = vmatprep.subr.mxu0 0.0
        %603 = vmatpush2.msra.mxu0 0.0
        %604 = vmatprep.subr.mxu0 0.0
        %605 = vmatpush2.msra.mxu0 0.0
        %606 = vmatprep.subr.mxu0 0.0
        %607 = vmatpush2.msra.mxu0 0.0
        %608 = vmatprep.subr.mxu0 0.0
        %609 = vmatpush2.msra.mxu0 0.0
        %610 = vmatprep.subr.mxu0 0.0
        %611 = vmatpush2.msra.mxu0 0.0
        %612 = vmatprep.subr.mxu0 0.0
        %613 = vmatpush2.msra.mxu0 0.0
        %614 = vmatprep.subr.mxu0 0.0
        %615 = vmatpush2.msra.mxu0 0.0
        %616 = vmatprep.subr.mxu0 0.0
        %617 = vmatpush2.msra.mxu0 0.0
        %618 = vmatprep.subr.mxu0 0.0
        %619 = vmatpush2.msra.mxu0 0.0
        %620 = vmatprep.mubr.f32.mxu0 0.0
        %621 = vmatmul.mubr.f32.gmra.mxu0 %v550
        %v622 = vpop.f32.mrf.mxu0
        %v623 = vadd.f32 0.0, %v622
        %v624 = vpop.f32.mrf.mxu0
        %v625 = vadd.f32 0.0, %v624
        %626 = vdwg.mxu0
        %627 = vst [vmem:[%s213] sm:$0xff] %v623
        %628 = vst [vmem:[%s213 + $0x8] sm:$0xff] %v625
        %s629 = sand.u32 %s118, 1
        %s630 = scalar_lea.sflag [#allocation5], %s629
        %s631 = sand.u32 %s118, 1
        %s632 = smul.addr %s631, 16
        %s633 = scalar_lea.vmem [#allocation6], %s632
        // Predicated region
        $region41: #{tpu_custom_call.1} parent=35 // pred_check
          %p634 = pneg %p128
        $region42: #{tpu_custom_call.1} parent=35 // pred_check_branch
          %636 = sbr.rel (%p634) target = $region44
        $region43: #{tpu_custom_call.1} parent=35 // pred_region
          %s638 = ssub.s32 256, 256
          %639 = vsyncadd %s630, %s638
          %s640 = smul.addr %s21, 2
          %s641 = smul.addr %s640, 128
          %s642 = scalar_lea.hbm %s4, %s641
          %s644 = sshll.u32 %s633, 4
          %s645 = int_to_ptr.vmem [resolvable:$true] %s644
          %647 = dma.vmem_to_hbm [thread:$0]  %s645, 256, %s642, %s630
        $region44: #{tpu_custom_call.1} parent=35 // pred_fallthru
          _
      $region36: #{tpu_custom_call.1} parent=5 // pred_fallthru
        _
      %p648 = scmp.le.s32.totalorder 2, %s16
      // Predicated region
      $region45: #{tpu_custom_call.1} parent=5 // pred_check
        %p649 = pneg %p648
      $region46: #{tpu_custom_call.1} parent=5 // pred_check_branch
        %651 = sbr.rel (%p649) target = $region48
      $region47: #{tpu_custom_call.1} parent=5 // pred_region
        %s652 = ssub.s32 %s16, 2
        // Predicated region
        $region49: #{tpu_custom_call.1} parent=47 // pred_check
          %p653 = pneg %p134
        $region50: #{tpu_custom_call.1} parent=47 // pred_check_branch
          %655 = sbr.rel (%p653) target = $region52
        $region51: #{tpu_custom_call.1} parent=47 // pred_region
          %s656 = sand.u32 %s119, 1
          %s657 = scalar_lea.sflag [#allocation5], %s656
          %s658 = sand.u32 %s119, 1
          %s659 = smul.addr %s658, 16
          %s660 = scalar_lea.vmem [#allocation6], %s659
          %661 = dma.done %s657, 256
        $region52: #{tpu_custom_call.1} parent=47 // pred_fallthru
          _
      $region48: #{tpu_custom_call.1} parent=5 // pred_fallthru
        _
    $region6: #{tpu_custom_call.1} parent=1 // loop_footer
      %s20 = sadd.s32 1, %s16
    $region7: #{tpu_custom_call.1} parent=1 // loop_footer_branch
      %15 = sbr.rel target = $region3
    $region8: #{tpu_custom_call.1} parent=1 // loop_exit
      _
    %662 = vsyncpa [#allocation4], 1
    %s663 = scalar_lea.sflag [#allocation4], 1
    %664 = vsyncpa %s663, 1
    %665 = vsyncpa [#allocation5], 1
    %s666 = scalar_lea.sflag [#allocation5], 1
    %667 = vsyncpa %s666, 1

</llo_original>
